<compile_context>
chip_gen: v5e
topology: v5e:2x2
jax: 0.10.0
libtpu: 0.0.40
codegen_flags: <defaults>
</compile_context>

<pallas_src>
import jax
import jax.numpy as jnp
from jax.experimental import pallas as pl
from jax.experimental.pallas import tpu as pltpu

hidden_dim = 4
num_class = 3


def ensemble_kernel(x_ref, w1_ref, b1_ref, w2_ref, b2_ref, out_ref):
    # x_ref:  (D_in, TB)  VMEM  (batch on lanes, lane-dense)
    # w1_ref: (H, D_in)   SMEM  (PyTorch nn.Linear orientation: (out, in))
    # b1_ref: (H,)        SMEM
    # w2_ref: (C, H)      SMEM
    # b2_ref: (C,)        SMEM
    # out_ref:(C, TB)     VMEM  log-probs, batch on lanes
    h_dim, d_in = w1_ref.shape
    c_dim = w2_ref.shape[0]
    tb = x_ref.shape[1]

    # ---- Layer 1: hid[h, :] = b1[h] + sum_k w1[h, k] * x[k, :]  (VPU MACs) ----
    # Bias splats hoisted: one (1, TB) vector per hidden unit, built once per tile.
    hid = [jnp.full((1, tb), b1_ref[h], dtype=jnp.float32) for h in range(h_dim)]
    for k in range(d_in):
        xk = x_ref[k:k + 1, :].astype(jnp.float32)          # (1, TB), lane-dense row
        for h in range(h_dim):
            hid[h] = hid[h] + w1_ref[h, k] * xk

    # ---- Layer 2: logits[c, :] = b2[c] + sum_h w2[c, h] * relu(hid[h, :]) ----
    logit = [jnp.full((1, tb), b2_ref[c], dtype=jnp.float32) for c in range(c_dim)]
    for h in range(h_dim):
        relu_h = jnp.maximum(hid[h], 0.0)                    # ReLU
        for c in range(c_dim):
            logit[c] = logit[c] + w2_ref[c, h] * relu_h

    # ---- Numerically stable log-softmax across the class rows (elementwise only;
    #      exp/log go to the EUP slot, max/add/sub stay on the VPU) ----
    m = logit[0]
    for c in range(1, c_dim):
        m = jnp.maximum(m, logit[c])
    s = jnp.exp(logit[0] - m)
    for c in range(1, c_dim):
        s = s + jnp.exp(logit[c] - m)
    lse = m + jnp.log(s)
    for c in range(c_dim):
        out_ref[c:c + 1, :] = (logit[c] - lse).astype(out_ref.dtype)


def ensemble_net_forward(x, w1, b1, w2, b2, *, block_b=2048):
    """x: (B, D_in); w1: (H, D_in); b1: (H,); w2: (C, H); b2: (C,) -> (B, C) log-probs.

    Weights/biases are in PyTorch nn.Linear orientation (out_features, in_features)."""
    B, D_in = x.shape
    H, _ = w1.shape
    C, _ = w2.shape

    def round_up(a, m):
        return ((a + m - 1) // m) * m

    # Batch lives on lanes: tile size TB is a multiple of 128; batch padded to grid*TB.
    TB = min(block_b, round_up(B, 128))
    grid_b = pl.cdiv(B, TB)
    B_pad = grid_b * TB

    x_t = jnp.asarray(x, jnp.float32).T                      # (D_in, B)
    if B_pad != B:
        x_t = jnp.pad(x_t, ((0, 0), (0, B_pad - B)))         # zero-pad extra lanes

    smem_spec = pl.BlockSpec(memory_space=pltpu.MemorySpace.SMEM)

    out_t = pl.pallas_call(
        ensemble_kernel,
        out_shape=jax.ShapeDtypeStruct((C, B_pad), jnp.float32),
        grid_spec=pl.GridSpec(
            grid=(grid_b,),
            in_specs=[
                pl.BlockSpec((D_in, TB), lambda i: (0, i)),   # x tile, batch on lanes
                smem_spec,                                    # w1 (H, D_in)
                smem_spec,                                    # b1 (H,)
                smem_spec,                                    # w2 (C, H)
                smem_spec,                                    # b2 (C,)
            ],
            out_specs=pl.BlockSpec((C, TB), lambda i: (0, i)),
        ),
        compiler_params=pltpu.CompilerParams(
            dimension_semantics=("parallel",),                # megacore-shard batch tiles
        ),
    )(
        x_t,
        w1.astype(jnp.float32),
        b1.astype(jnp.float32),
        w2.astype(jnp.float32),
        b2.astype(jnp.float32),
    )

    return out_t[:, :B].T                                     # (B, C) log-probs


if __name__ == "__main__":
    key = jax.random.PRNGKey(0)
    kx, k1, k2, k3, k4 = jax.random.split(key, 5)

    batch = 8
    input_dim = 16

    x = jax.random.normal(kx, (batch, input_dim), jnp.float32)
    # Parameters in nn.Linear orientation: weight (out, in), bias (out,)
    w1 = jax.random.normal(k1, (hidden_dim, input_dim), jnp.float32) * 0.1
    b1 = jax.random.normal(k2, (hidden_dim,), jnp.float32) * 0.1
    w2 = jax.random.normal(k3, (num_class, hidden_dim), jnp.float32) * 0.1
    b2 = jax.random.normal(k4, (num_class,), jnp.float32) * 0.1

    out = ensemble_net_forward(x, w1, b1, w2, b2)
    out = jax.block_until_ready(out)

    # Pure-JAX reference (matches the PyTorch forward: Linear->ReLU->Linear->LogSoftmax).
    hid = jnp.maximum(x @ w1.T + b1, 0.0)
    logits = hid @ w2.T + b2
    ref = jax.nn.log_softmax(logits, axis=-1)
    assert out.shape == ref.shape
    assert jnp.allclose(out, ref, atol=1e-5), "mismatch vs reference"

    print("KERNEL_OK")
</pallas_src>

<mosaic_0001>
module attributes {stable_mosaic.version = 11 : i64} {
  func.func @ensemble_kernel(%arg0: i32, %arg1: memref<16x128xf32, #tpu.memory_space<vmem>>, %arg2: memref<4x16xf32, #tpu.memory_space<smem>>, %arg3: memref<4xf32, #tpu.memory_space<smem>>, %arg4: memref<3x4xf32, #tpu.memory_space<smem>>, %arg5: memref<3xf32, #tpu.memory_space<smem>>, %arg6: memref<3x128xf32, #tpu.memory_space<vmem>>) attributes {dimension_semantics = [#tpu.dimension_semantics<parallel>], iteration_bounds = array<i64: 1>, scalar_prefetch = 0 : i64, scratch_operands = 0 : i64, tpu.core_type = #tpu.core_type<tc>, window_params = [{transform_indices = @transform_0, window_bounds = array<i64: 16, 128>}, {transform_indices = @transform_1, window_bounds = array<i64: 4, 16>}, {transform_indices = @transform_2, window_bounds = array<i64: 4>}, {transform_indices = @transform_3, window_bounds = array<i64: 3, 4>}, {transform_indices = @transform_4, window_bounds = array<i64: 3>}, {transform_indices = @transform_5, window_bounds = array<i64: 3, 128>}]} {
    %c0 = arith.constant 0 : index
    %0 = memref.load %arg3[%c0] : memref<4xf32, #tpu.memory_space<smem>>
    %1 = vector.broadcast %0 : f32 to vector<1x128xf32>
    %c1 = arith.constant 1 : index
    %2 = memref.load %arg3[%c1] : memref<4xf32, #tpu.memory_space<smem>>
    %3 = vector.broadcast %2 : f32 to vector<1x128xf32>
    %c2 = arith.constant 2 : index
    %4 = memref.load %arg3[%c2] : memref<4xf32, #tpu.memory_space<smem>>
    %5 = vector.broadcast %4 : f32 to vector<1x128xf32>
    %c3 = arith.constant 3 : index
    %6 = memref.load %arg3[%c3] : memref<4xf32, #tpu.memory_space<smem>>
    %7 = vector.broadcast %6 : f32 to vector<1x128xf32>
    %c0_0 = arith.constant 0 : index
    %c0_1 = arith.constant 0 : index
    %8 = vector.load %arg1[%c0_0, %c0_1] : memref<16x128xf32, #tpu.memory_space<vmem>>, vector<1x128xf32>
    %c0_2 = arith.constant 0 : index
    %c0_3 = arith.constant 0 : index
    %9 = memref.load %arg2[%c0_2, %c0_3] : memref<4x16xf32, #tpu.memory_space<smem>>
    %10 = vector.broadcast %9 : f32 to vector<1x128xf32>
    %11 = arith.mulf %10, %8 : vector<1x128xf32>
    %12 = arith.addf %1, %11 : vector<1x128xf32>
    %c1_4 = arith.constant 1 : index
    %c0_5 = arith.constant 0 : index
    %13 = memref.load %arg2[%c1_4, %c0_5] : memref<4x16xf32, #tpu.memory_space<smem>>
    %14 = vector.broadcast %13 : f32 to vector<1x128xf32>
    %15 = arith.mulf %14, %8 : vector<1x128xf32>
    %16 = arith.addf %3, %15 : vector<1x128xf32>
    %c2_6 = arith.constant 2 : index
    %c0_7 = arith.constant 0 : index
    %17 = memref.load %arg2[%c2_6, %c0_7] : memref<4x16xf32, #tpu.memory_space<smem>>
    %18 = vector.broadcast %17 : f32 to vector<1x128xf32>
    %19 = arith.mulf %18, %8 : vector<1x128xf32>
    %20 = arith.addf %5, %19 : vector<1x128xf32>
    %c3_8 = arith.constant 3 : index
    %c0_9 = arith.constant 0 : index
    %21 = memref.load %arg2[%c3_8, %c0_9] : memref<4x16xf32, #tpu.memory_space<smem>>
    %22 = vector.broadcast %21 : f32 to vector<1x128xf32>
    %23 = arith.mulf %22, %8 : vector<1x128xf32>
    %24 = arith.addf %7, %23 : vector<1x128xf32>
    %c1_10 = arith.constant 1 : index
    %c0_11 = arith.constant 0 : index
    %25 = vector.load %arg1[%c1_10, %c0_11] : memref<16x128xf32, #tpu.memory_space<vmem>>, vector<1x128xf32>
    %c0_12 = arith.constant 0 : index
    %c1_13 = arith.constant 1 : index
    %26 = memref.load %arg2[%c0_12, %c1_13] : memref<4x16xf32, #tpu.memory_space<smem>>
    %27 = vector.broadcast %26 : f32 to vector<1x128xf32>
    %28 = arith.mulf %27, %25 : vector<1x128xf32>
    %29 = arith.addf %12, %28 : vector<1x128xf32>
    %c1_14 = arith.constant 1 : index
    %c1_15 = arith.constant 1 : index
    %30 = memref.load %arg2[%c1_14, %c1_15] : memref<4x16xf32, #tpu.memory_space<smem>>
    %31 = vector.broadcast %30 : f32 to vector<1x128xf32>
    %32 = arith.mulf %31, %25 : vector<1x128xf32>
    %33 = arith.addf %16, %32 : vector<1x128xf32>
    %c2_16 = arith.constant 2 : index
    %c1_17 = arith.constant 1 : index
    %34 = memref.load %arg2[%c2_16, %c1_17] : memref<4x16xf32, #tpu.memory_space<smem>>
    %35 = vector.broadcast %34 : f32 to vector<1x128xf32>
    %36 = arith.mulf %35, %25 : vector<1x128xf32>
    %37 = arith.addf %20, %36 : vector<1x128xf32>
    %c3_18 = arith.constant 3 : index
    %c1_19 = arith.constant 1 : index
    %38 = memref.load %arg2[%c3_18, %c1_19] : memref<4x16xf32, #tpu.memory_space<smem>>
    %39 = vector.broadcast %38 : f32 to vector<1x128xf32>
    %40 = arith.mulf %39, %25 : vector<1x128xf32>
    %41 = arith.addf %24, %40 : vector<1x128xf32>
    %c2_20 = arith.constant 2 : index
    %c0_21 = arith.constant 0 : index
    %42 = vector.load %arg1[%c2_20, %c0_21] : memref<16x128xf32, #tpu.memory_space<vmem>>, vector<1x128xf32>
    %c0_22 = arith.constant 0 : index
    %c2_23 = arith.constant 2 : index
    %43 = memref.load %arg2[%c0_22, %c2_23] : memref<4x16xf32, #tpu.memory_space<smem>>
    %44 = vector.broadcast %43 : f32 to vector<1x128xf32>
    %45 = arith.mulf %44, %42 : vector<1x128xf32>
    %46 = arith.addf %29, %45 : vector<1x128xf32>
    %c1_24 = arith.constant 1 : index
    %c2_25 = arith.constant 2 : index
    %47 = memref.load %arg2[%c1_24, %c2_25] : memref<4x16xf32, #tpu.memory_space<smem>>
    %48 = vector.broadcast %47 : f32 to vector<1x128xf32>
    %49 = arith.mulf %48, %42 : vector<1x128xf32>
    %50 = arith.addf %33, %49 : vector<1x128xf32>
    %c2_26 = arith.constant 2 : index
    %c2_27 = arith.constant 2 : index
    %51 = memref.load %arg2[%c2_26, %c2_27] : memref<4x16xf32, #tpu.memory_space<smem>>
    %52 = vector.broadcast %51 : f32 to vector<1x128xf32>
    %53 = arith.mulf %52, %42 : vector<1x128xf32>
    %54 = arith.addf %37, %53 : vector<1x128xf32>
    %c3_28 = arith.constant 3 : index
    %c2_29 = arith.constant 2 : index
    %55 = memref.load %arg2[%c3_28, %c2_29] : memref<4x16xf32, #tpu.memory_space<smem>>
    %56 = vector.broadcast %55 : f32 to vector<1x128xf32>
    %57 = arith.mulf %56, %42 : vector<1x128xf32>
    %58 = arith.addf %41, %57 : vector<1x128xf32>
    %c3_30 = arith.constant 3 : index
    %c0_31 = arith.constant 0 : index
    %59 = vector.load %arg1[%c3_30, %c0_31] : memref<16x128xf32, #tpu.memory_space<vmem>>, vector<1x128xf32>
    %c0_32 = arith.constant 0 : index
    %c3_33 = arith.constant 3 : index
    %60 = memref.load %arg2[%c0_32, %c3_33] : memref<4x16xf32, #tpu.memory_space<smem>>
    %61 = vector.broadcast %60 : f32 to vector<1x128xf32>
    %62 = arith.mulf %61, %59 : vector<1x128xf32>
    %63 = arith.addf %46, %62 : vector<1x128xf32>
    %c1_34 = arith.constant 1 : index
    %c3_35 = arith.constant 3 : index
    %64 = memref.load %arg2[%c1_34, %c3_35] : memref<4x16xf32, #tpu.memory_space<smem>>
    %65 = vector.broadcast %64 : f32 to vector<1x128xf32>
    %66 = arith.mulf %65, %59 : vector<1x128xf32>
    %67 = arith.addf %50, %66 : vector<1x128xf32>
    %c2_36 = arith.constant 2 : index
    %c3_37 = arith.constant 3 : index
    %68 = memref.load %arg2[%c2_36, %c3_37] : memref<4x16xf32, #tpu.memory_space<smem>>
    %69 = vector.broadcast %68 : f32 to vector<1x128xf32>
    %70 = arith.mulf %69, %59 : vector<1x128xf32>
    %71 = arith.addf %54, %70 : vector<1x128xf32>
    %c3_38 = arith.constant 3 : index
    %c3_39 = arith.constant 3 : index
    %72 = memref.load %arg2[%c3_38, %c3_39] : memref<4x16xf32, #tpu.memory_space<smem>>
    %73 = vector.broadcast %72 : f32 to vector<1x128xf32>
    %74 = arith.mulf %73, %59 : vector<1x128xf32>
    %75 = arith.addf %58, %74 : vector<1x128xf32>
    %c4 = arith.constant 4 : index
    %c0_40 = arith.constant 0 : index
    %76 = vector.load %arg1[%c4, %c0_40] : memref<16x128xf32, #tpu.memory_space<vmem>>, vector<1x128xf32>
    %c0_41 = arith.constant 0 : index
    %c4_42 = arith.constant 4 : index
    %77 = memref.load %arg2[%c0_41, %c4_42] : memref<4x16xf32, #tpu.memory_space<smem>>
    %78 = vector.broadcast %77 : f32 to vector<1x128xf32>
    %79 = arith.mulf %78, %76 : vector<1x128xf32>
    %80 = arith.addf %63, %79 : vector<1x128xf32>
    %c1_43 = arith.constant 1 : index
    %c4_44 = arith.constant 4 : index
    %81 = memref.load %arg2[%c1_43, %c4_44] : memref<4x16xf32, #tpu.memory_space<smem>>
    %82 = vector.broadcast %81 : f32 to vector<1x128xf32>
    %83 = arith.mulf %82, %76 : vector<1x128xf32>
    %84 = arith.addf %67, %83 : vector<1x128xf32>
    %c2_45 = arith.constant 2 : index
    %c4_46 = arith.constant 4 : index
    %85 = memref.load %arg2[%c2_45, %c4_46] : memref<4x16xf32, #tpu.memory_space<smem>>
    %86 = vector.broadcast %85 : f32 to vector<1x128xf32>
    %87 = arith.mulf %86, %76 : vector<1x128xf32>
    %88 = arith.addf %71, %87 : vector<1x128xf32>
    %c3_47 = arith.constant 3 : index
    %c4_48 = arith.constant 4 : index
    %89 = memref.load %arg2[%c3_47, %c4_48] : memref<4x16xf32, #tpu.memory_space<smem>>
    %90 = vector.broadcast %89 : f32 to vector<1x128xf32>
    %91 = arith.mulf %90, %76 : vector<1x128xf32>
    %92 = arith.addf %75, %91 : vector<1x128xf32>
    %c5 = arith.constant 5 : index
    %c0_49 = arith.constant 0 : index
    %93 = vector.load %arg1[%c5, %c0_49] : memref<16x128xf32, #tpu.memory_space<vmem>>, vector<1x128xf32>
    %c0_50 = arith.constant 0 : index
    %c5_51 = arith.constant 5 : index
    %94 = memref.load %arg2[%c0_50, %c5_51] : memref<4x16xf32, #tpu.memory_space<smem>>
    %95 = vector.broadcast %94 : f32 to vector<1x128xf32>
    %96 = arith.mulf %95, %93 : vector<1x128xf32>
    %97 = arith.addf %80, %96 : vector<1x128xf32>
    %c1_52 = arith.constant 1 : index
    %c5_53 = arith.constant 5 : index
    %98 = memref.load %arg2[%c1_52, %c5_53] : memref<4x16xf32, #tpu.memory_space<smem>>
    %99 = vector.broadcast %98 : f32 to vector<1x128xf32>
    %100 = arith.mulf %99, %93 : vector<1x128xf32>
    %101 = arith.addf %84, %100 : vector<1x128xf32>
    %c2_54 = arith.constant 2 : index
    %c5_55 = arith.constant 5 : index
    %102 = memref.load %arg2[%c2_54, %c5_55] : memref<4x16xf32, #tpu.memory_space<smem>>
    %103 = vector.broadcast %102 : f32 to vector<1x128xf32>
    %104 = arith.mulf %103, %93 : vector<1x128xf32>
    %105 = arith.addf %88, %104 : vector<1x128xf32>
    %c3_56 = arith.constant 3 : index
    %c5_57 = arith.constant 5 : index
    %106 = memref.load %arg2[%c3_56, %c5_57] : memref<4x16xf32, #tpu.memory_space<smem>>
    %107 = vector.broadcast %106 : f32 to vector<1x128xf32>
    %108 = arith.mulf %107, %93 : vector<1x128xf32>
    %109 = arith.addf %92, %108 : vector<1x128xf32>
    %c6 = arith.constant 6 : index
    %c0_58 = arith.constant 0 : index
    %110 = vector.load %arg1[%c6, %c0_58] : memref<16x128xf32, #tpu.memory_space<vmem>>, vector<1x128xf32>
    %c0_59 = arith.constant 0 : index
    %c6_60 = arith.constant 6 : index
    %111 = memref.load %arg2[%c0_59, %c6_60] : memref<4x16xf32, #tpu.memory_space<smem>>
    %112 = vector.broadcast %111 : f32 to vector<1x128xf32>
    %113 = arith.mulf %112, %110 : vector<1x128xf32>
    %114 = arith.addf %97, %113 : vector<1x128xf32>
    %c1_61 = arith.constant 1 : index
    %c6_62 = arith.constant 6 : index
    %115 = memref.load %arg2[%c1_61, %c6_62] : memref<4x16xf32, #tpu.memory_space<smem>>
    %116 = vector.broadcast %115 : f32 to vector<1x128xf32>
    %117 = arith.mulf %116, %110 : vector<1x128xf32>
    %118 = arith.addf %101, %117 : vector<1x128xf32>
    %c2_63 = arith.constant 2 : index
    %c6_64 = arith.constant 6 : index
    %119 = memref.load %arg2[%c2_63, %c6_64] : memref<4x16xf32, #tpu.memory_space<smem>>
    %120 = vector.broadcast %119 : f32 to vector<1x128xf32>
    %121 = arith.mulf %120, %110 : vector<1x128xf32>
    %122 = arith.addf %105, %121 : vector<1x128xf32>
    %c3_65 = arith.constant 3 : index
    %c6_66 = arith.constant 6 : index
    %123 = memref.load %arg2[%c3_65, %c6_66] : memref<4x16xf32, #tpu.memory_space<smem>>
    %124 = vector.broadcast %123 : f32 to vector<1x128xf32>
    %125 = arith.mulf %124, %110 : vector<1x128xf32>
    %126 = arith.addf %109, %125 : vector<1x128xf32>
    %c7 = arith.constant 7 : index
    %c0_67 = arith.constant 0 : index
    %127 = vector.load %arg1[%c7, %c0_67] : memref<16x128xf32, #tpu.memory_space<vmem>>, vector<1x128xf32>
    %c0_68 = arith.constant 0 : index
    %c7_69 = arith.constant 7 : index
    %128 = memref.load %arg2[%c0_68, %c7_69] : memref<4x16xf32, #tpu.memory_space<smem>>
    %129 = vector.broadcast %128 : f32 to vector<1x128xf32>
    %130 = arith.mulf %129, %127 : vector<1x128xf32>
    %131 = arith.addf %114, %130 : vector<1x128xf32>
    %c1_70 = arith.constant 1 : index
    %c7_71 = arith.constant 7 : index
    %132 = memref.load %arg2[%c1_70, %c7_71] : memref<4x16xf32, #tpu.memory_space<smem>>
    %133 = vector.broadcast %132 : f32 to vector<1x128xf32>
    %134 = arith.mulf %133, %127 : vector<1x128xf32>
    %135 = arith.addf %118, %134 : vector<1x128xf32>
    %c2_72 = arith.constant 2 : index
    %c7_73 = arith.constant 7 : index
    %136 = memref.load %arg2[%c2_72, %c7_73] : memref<4x16xf32, #tpu.memory_space<smem>>
    %137 = vector.broadcast %136 : f32 to vector<1x128xf32>
    %138 = arith.mulf %137, %127 : vector<1x128xf32>
    %139 = arith.addf %122, %138 : vector<1x128xf32>
    %c3_74 = arith.constant 3 : index
    %c7_75 = arith.constant 7 : index
    %140 = memref.load %arg2[%c3_74, %c7_75] : memref<4x16xf32, #tpu.memory_space<smem>>
    %141 = vector.broadcast %140 : f32 to vector<1x128xf32>
    %142 = arith.mulf %141, %127 : vector<1x128xf32>
    %143 = arith.addf %126, %142 : vector<1x128xf32>
    %c8 = arith.constant 8 : index
    %c0_76 = arith.constant 0 : index
    %144 = vector.load %arg1[%c8, %c0_76] : memref<16x128xf32, #tpu.memory_space<vmem>>, vector<1x128xf32>
    %c0_77 = arith.constant 0 : index
    %c8_78 = arith.constant 8 : index
    %145 = memref.load %arg2[%c0_77, %c8_78] : memref<4x16xf32, #tpu.memory_space<smem>>
    %146 = vector.broadcast %145 : f32 to vector<1x128xf32>
    %147 = arith.mulf %146, %144 : vector<1x128xf32>
    %148 = arith.addf %131, %147 : vector<1x128xf32>
    %c1_79 = arith.constant 1 : index
    %c8_80 = arith.constant 8 : index
    %149 = memref.load %arg2[%c1_79, %c8_80] : memref<4x16xf32, #tpu.memory_space<smem>>
    %150 = vector.broadcast %149 : f32 to vector<1x128xf32>
    %151 = arith.mulf %150, %144 : vector<1x128xf32>
    %152 = arith.addf %135, %151 : vector<1x128xf32>
    %c2_81 = arith.constant 2 : index
    %c8_82 = arith.constant 8 : index
    %153 = memref.load %arg2[%c2_81, %c8_82] : memref<4x16xf32, #tpu.memory_space<smem>>
    %154 = vector.broadcast %153 : f32 to vector<1x128xf32>
    %155 = arith.mulf %154, %144 : vector<1x128xf32>
    %156 = arith.addf %139, %155 : vector<1x128xf32>
    %c3_83 = arith.constant 3 : index
    %c8_84 = arith.constant 8 : index
    %157 = memref.load %arg2[%c3_83, %c8_84] : memref<4x16xf32, #tpu.memory_space<smem>>
    %158 = vector.broadcast %157 : f32 to vector<1x128xf32>
    %159 = arith.mulf %158, %144 : vector<1x128xf32>
    %160 = arith.addf %143, %159 : vector<1x128xf32>
    %c9 = arith.constant 9 : index
    %c0_85 = arith.constant 0 : index
    %161 = vector.load %arg1[%c9, %c0_85] : memref<16x128xf32, #tpu.memory_space<vmem>>, vector<1x128xf32>
    %c0_86 = arith.constant 0 : index
    %c9_87 = arith.constant 9 : index
    %162 = memref.load %arg2[%c0_86, %c9_87] : memref<4x16xf32, #tpu.memory_space<smem>>
    %163 = vector.broadcast %162 : f32 to vector<1x128xf32>
    %164 = arith.mulf %163, %161 : vector<1x128xf32>
    %165 = arith.addf %148, %164 : vector<1x128xf32>
    %c1_88 = arith.constant 1 : index
    %c9_89 = arith.constant 9 : index
    %166 = memref.load %arg2[%c1_88, %c9_89] : memref<4x16xf32, #tpu.memory_space<smem>>
    %167 = vector.broadcast %166 : f32 to vector<1x128xf32>
    %168 = arith.mulf %167, %161 : vector<1x128xf32>
    %169 = arith.addf %152, %168 : vector<1x128xf32>
    %c2_90 = arith.constant 2 : index
    %c9_91 = arith.constant 9 : index
    %170 = memref.load %arg2[%c2_90, %c9_91] : memref<4x16xf32, #tpu.memory_space<smem>>
    %171 = vector.broadcast %170 : f32 to vector<1x128xf32>
    %172 = arith.mulf %171, %161 : vector<1x128xf32>
    %173 = arith.addf %156, %172 : vector<1x128xf32>
    %c3_92 = arith.constant 3 : index
    %c9_93 = arith.constant 9 : index
    %174 = memref.load %arg2[%c3_92, %c9_93] : memref<4x16xf32, #tpu.memory_space<smem>>
    %175 = vector.broadcast %174 : f32 to vector<1x128xf32>
    %176 = arith.mulf %175, %161 : vector<1x128xf32>
    %177 = arith.addf %160, %176 : vector<1x128xf32>
    %c10 = arith.constant 10 : index
    %c0_94 = arith.constant 0 : index
    %178 = vector.load %arg1[%c10, %c0_94] : memref<16x128xf32, #tpu.memory_space<vmem>>, vector<1x128xf32>
    %c0_95 = arith.constant 0 : index
    %c10_96 = arith.constant 10 : index
    %179 = memref.load %arg2[%c0_95, %c10_96] : memref<4x16xf32, #tpu.memory_space<smem>>
    %180 = vector.broadcast %179 : f32 to vector<1x128xf32>
    %181 = arith.mulf %180, %178 : vector<1x128xf32>
    %182 = arith.addf %165, %181 : vector<1x128xf32>
    %c1_97 = arith.constant 1 : index
    %c10_98 = arith.constant 10 : index
    %183 = memref.load %arg2[%c1_97, %c10_98] : memref<4x16xf32, #tpu.memory_space<smem>>
    %184 = vector.broadcast %183 : f32 to vector<1x128xf32>
    %185 = arith.mulf %184, %178 : vector<1x128xf32>
    %186 = arith.addf %169, %185 : vector<1x128xf32>
    %c2_99 = arith.constant 2 : index
    %c10_100 = arith.constant 10 : index
    %187 = memref.load %arg2[%c2_99, %c10_100] : memref<4x16xf32, #tpu.memory_space<smem>>
    %188 = vector.broadcast %187 : f32 to vector<1x128xf32>
    %189 = arith.mulf %188, %178 : vector<1x128xf32>
    %190 = arith.addf %173, %189 : vector<1x128xf32>
    %c3_101 = arith.constant 3 : index
    %c10_102 = arith.constant 10 : index
    %191 = memref.load %arg2[%c3_101, %c10_102] : memref<4x16xf32, #tpu.memory_space<smem>>
    %192 = vector.broadcast %191 : f32 to vector<1x128xf32>
    %193 = arith.mulf %192, %178 : vector<1x128xf32>
    %194 = arith.addf %177, %193 : vector<1x128xf32>
    %c11 = arith.constant 11 : index
    %c0_103 = arith.constant 0 : index
    %195 = vector.load %arg1[%c11, %c0_103] : memref<16x128xf32, #tpu.memory_space<vmem>>, vector<1x128xf32>
    %c0_104 = arith.constant 0 : index
    %c11_105 = arith.constant 11 : index
    %196 = memref.load %arg2[%c0_104, %c11_105] : memref<4x16xf32, #tpu.memory_space<smem>>
    %197 = vector.broadcast %196 : f32 to vector<1x128xf32>
    %198 = arith.mulf %197, %195 : vector<1x128xf32>
    %199 = arith.addf %182, %198 : vector<1x128xf32>
    %c1_106 = arith.constant 1 : index
    %c11_107 = arith.constant 11 : index
    %200 = memref.load %arg2[%c1_106, %c11_107] : memref<4x16xf32, #tpu.memory_space<smem>>
    %201 = vector.broadcast %200 : f32 to vector<1x128xf32>
    %202 = arith.mulf %201, %195 : vector<1x128xf32>
    %203 = arith.addf %186, %202 : vector<1x128xf32>
    %c2_108 = arith.constant 2 : index
    %c11_109 = arith.constant 11 : index
    %204 = memref.load %arg2[%c2_108, %c11_109] : memref<4x16xf32, #tpu.memory_space<smem>>
    %205 = vector.broadcast %204 : f32 to vector<1x128xf32>
    %206 = arith.mulf %205, %195 : vector<1x128xf32>
    %207 = arith.addf %190, %206 : vector<1x128xf32>
    %c3_110 = arith.constant 3 : index
    %c11_111 = arith.constant 11 : index
    %208 = memref.load %arg2[%c3_110, %c11_111] : memref<4x16xf32, #tpu.memory_space<smem>>
    %209 = vector.broadcast %208 : f32 to vector<1x128xf32>
    %210 = arith.mulf %209, %195 : vector<1x128xf32>
    %211 = arith.addf %194, %210 : vector<1x128xf32>
    %c12 = arith.constant 12 : index
    %c0_112 = arith.constant 0 : index
    %212 = vector.load %arg1[%c12, %c0_112] : memref<16x128xf32, #tpu.memory_space<vmem>>, vector<1x128xf32>
    %c0_113 = arith.constant 0 : index
    %c12_114 = arith.constant 12 : index
    %213 = memref.load %arg2[%c0_113, %c12_114] : memref<4x16xf32, #tpu.memory_space<smem>>
    %214 = vector.broadcast %213 : f32 to vector<1x128xf32>
    %215 = arith.mulf %214, %212 : vector<1x128xf32>
    %216 = arith.addf %199, %215 : vector<1x128xf32>
    %c1_115 = arith.constant 1 : index
    %c12_116 = arith.constant 12 : index
    %217 = memref.load %arg2[%c1_115, %c12_116] : memref<4x16xf32, #tpu.memory_space<smem>>
    %218 = vector.broadcast %217 : f32 to vector<1x128xf32>
    %219 = arith.mulf %218, %212 : vector<1x128xf32>
    %220 = arith.addf %203, %219 : vector<1x128xf32>
    %c2_117 = arith.constant 2 : index
    %c12_118 = arith.constant 12 : index
    %221 = memref.load %arg2[%c2_117, %c12_118] : memref<4x16xf32, #tpu.memory_space<smem>>
    %222 = vector.broadcast %221 : f32 to vector<1x128xf32>
    %223 = arith.mulf %222, %212 : vector<1x128xf32>
    %224 = arith.addf %207, %223 : vector<1x128xf32>
    %c3_119 = arith.constant 3 : index
    %c12_120 = arith.constant 12 : index
    %225 = memref.load %arg2[%c3_119, %c12_120] : memref<4x16xf32, #tpu.memory_space<smem>>
    %226 = vector.broadcast %225 : f32 to vector<1x128xf32>
    %227 = arith.mulf %226, %212 : vector<1x128xf32>
    %228 = arith.addf %211, %227 : vector<1x128xf32>
    %c13 = arith.constant 13 : index
    %c0_121 = arith.constant 0 : index
    %229 = vector.load %arg1[%c13, %c0_121] : memref<16x128xf32, #tpu.memory_space<vmem>>, vector<1x128xf32>
    %c0_122 = arith.constant 0 : index
    %c13_123 = arith.constant 13 : index
    %230 = memref.load %arg2[%c0_122, %c13_123] : memref<4x16xf32, #tpu.memory_space<smem>>
    %231 = vector.broadcast %230 : f32 to vector<1x128xf32>
    %232 = arith.mulf %231, %229 : vector<1x128xf32>
    %233 = arith.addf %216, %232 : vector<1x128xf32>
    %c1_124 = arith.constant 1 : index
    %c13_125 = arith.constant 13 : index
    %234 = memref.load %arg2[%c1_124, %c13_125] : memref<4x16xf32, #tpu.memory_space<smem>>
    %235 = vector.broadcast %234 : f32 to vector<1x128xf32>
    %236 = arith.mulf %235, %229 : vector<1x128xf32>
    %237 = arith.addf %220, %236 : vector<1x128xf32>
    %c2_126 = arith.constant 2 : index
    %c13_127 = arith.constant 13 : index
    %238 = memref.load %arg2[%c2_126, %c13_127] : memref<4x16xf32, #tpu.memory_space<smem>>
    %239 = vector.broadcast %238 : f32 to vector<1x128xf32>
    %240 = arith.mulf %239, %229 : vector<1x128xf32>
    %241 = arith.addf %224, %240 : vector<1x128xf32>
    %c3_128 = arith.constant 3 : index
    %c13_129 = arith.constant 13 : index
    %242 = memref.load %arg2[%c3_128, %c13_129] : memref<4x16xf32, #tpu.memory_space<smem>>
    %243 = vector.broadcast %242 : f32 to vector<1x128xf32>
    %244 = arith.mulf %243, %229 : vector<1x128xf32>
    %245 = arith.addf %228, %244 : vector<1x128xf32>
    %c14 = arith.constant 14 : index
    %c0_130 = arith.constant 0 : index
    %246 = vector.load %arg1[%c14, %c0_130] : memref<16x128xf32, #tpu.memory_space<vmem>>, vector<1x128xf32>
    %c0_131 = arith.constant 0 : index
    %c14_132 = arith.constant 14 : index
    %247 = memref.load %arg2[%c0_131, %c14_132] : memref<4x16xf32, #tpu.memory_space<smem>>
    %248 = vector.broadcast %247 : f32 to vector<1x128xf32>
    %249 = arith.mulf %248, %246 : vector<1x128xf32>
    %250 = arith.addf %233, %249 : vector<1x128xf32>
    %c1_133 = arith.constant 1 : index
    %c14_134 = arith.constant 14 : index
    %251 = memref.load %arg2[%c1_133, %c14_134] : memref<4x16xf32, #tpu.memory_space<smem>>
    %252 = vector.broadcast %251 : f32 to vector<1x128xf32>
    %253 = arith.mulf %252, %246 : vector<1x128xf32>
    %254 = arith.addf %237, %253 : vector<1x128xf32>
    %c2_135 = arith.constant 2 : index
    %c14_136 = arith.constant 14 : index
    %255 = memref.load %arg2[%c2_135, %c14_136] : memref<4x16xf32, #tpu.memory_space<smem>>
    %256 = vector.broadcast %255 : f32 to vector<1x128xf32>
    %257 = arith.mulf %256, %246 : vector<1x128xf32>
    %258 = arith.addf %241, %257 : vector<1x128xf32>
    %c3_137 = arith.constant 3 : index
    %c14_138 = arith.constant 14 : index
    %259 = memref.load %arg2[%c3_137, %c14_138] : memref<4x16xf32, #tpu.memory_space<smem>>
    %260 = vector.broadcast %259 : f32 to vector<1x128xf32>
    %261 = arith.mulf %260, %246 : vector<1x128xf32>
    %262 = arith.addf %245, %261 : vector<1x128xf32>
    %c15 = arith.constant 15 : index
    %c0_139 = arith.constant 0 : index
    %263 = vector.load %arg1[%c15, %c0_139] : memref<16x128xf32, #tpu.memory_space<vmem>>, vector<1x128xf32>
    %c0_140 = arith.constant 0 : index
    %c15_141 = arith.constant 15 : index
    %264 = memref.load %arg2[%c0_140, %c15_141] : memref<4x16xf32, #tpu.memory_space<smem>>
    %265 = vector.broadcast %264 : f32 to vector<1x128xf32>
    %266 = arith.mulf %265, %263 : vector<1x128xf32>
    %267 = arith.addf %250, %266 : vector<1x128xf32>
    %c1_142 = arith.constant 1 : index
    %c15_143 = arith.constant 15 : index
    %268 = memref.load %arg2[%c1_142, %c15_143] : memref<4x16xf32, #tpu.memory_space<smem>>
    %269 = vector.broadcast %268 : f32 to vector<1x128xf32>
    %270 = arith.mulf %269, %263 : vector<1x128xf32>
    %271 = arith.addf %254, %270 : vector<1x128xf32>
    %c2_144 = arith.constant 2 : index
    %c15_145 = arith.constant 15 : index
    %272 = memref.load %arg2[%c2_144, %c15_145] : memref<4x16xf32, #tpu.memory_space<smem>>
    %273 = vector.broadcast %272 : f32 to vector<1x128xf32>
    %274 = arith.mulf %273, %263 : vector<1x128xf32>
    %275 = arith.addf %258, %274 : vector<1x128xf32>
    %c3_146 = arith.constant 3 : index
    %c15_147 = arith.constant 15 : index
    %276 = memref.load %arg2[%c3_146, %c15_147] : memref<4x16xf32, #tpu.memory_space<smem>>
    %277 = vector.broadcast %276 : f32 to vector<1x128xf32>
    %278 = arith.mulf %277, %263 : vector<1x128xf32>
    %279 = arith.addf %262, %278 : vector<1x128xf32>
    %c0_148 = arith.constant 0 : index
    %280 = memref.load %arg5[%c0_148] : memref<3xf32, #tpu.memory_space<smem>>
    %281 = vector.broadcast %280 : f32 to vector<1x128xf32>
    %c1_149 = arith.constant 1 : index
    %282 = memref.load %arg5[%c1_149] : memref<3xf32, #tpu.memory_space<smem>>
    %283 = vector.broadcast %282 : f32 to vector<1x128xf32>
    %c2_150 = arith.constant 2 : index
    %284 = memref.load %arg5[%c2_150] : memref<3xf32, #tpu.memory_space<smem>>
    %285 = vector.broadcast %284 : f32 to vector<1x128xf32>
    %cst = arith.constant 0.000000e+00 : f32
    %286 = vector.broadcast %cst : f32 to vector<1x128xf32>
    %287 = arith.maximumf %267, %286 : vector<1x128xf32>
    %c0_151 = arith.constant 0 : index
    %c0_152 = arith.constant 0 : index
    %288 = memref.load %arg4[%c0_151, %c0_152] : memref<3x4xf32, #tpu.memory_space<smem>>
    %289 = vector.broadcast %288 : f32 to vector<1x128xf32>
    %290 = arith.mulf %289, %287 : vector<1x128xf32>
    %291 = arith.addf %281, %290 : vector<1x128xf32>
    %c1_153 = arith.constant 1 : index
    %c0_154 = arith.constant 0 : index
    %292 = memref.load %arg4[%c1_153, %c0_154] : memref<3x4xf32, #tpu.memory_space<smem>>
    %293 = vector.broadcast %292 : f32 to vector<1x128xf32>
    %294 = arith.mulf %293, %287 : vector<1x128xf32>
    %295 = arith.addf %283, %294 : vector<1x128xf32>
    %c2_155 = arith.constant 2 : index
    %c0_156 = arith.constant 0 : index
    %296 = memref.load %arg4[%c2_155, %c0_156] : memref<3x4xf32, #tpu.memory_space<smem>>
    %297 = vector.broadcast %296 : f32 to vector<1x128xf32>
    %298 = arith.mulf %297, %287 : vector<1x128xf32>
    %299 = arith.addf %285, %298 : vector<1x128xf32>
    %cst_157 = arith.constant 0.000000e+00 : f32
    %300 = vector.broadcast %cst_157 : f32 to vector<1x128xf32>
    %301 = arith.maximumf %271, %300 : vector<1x128xf32>
    %c0_158 = arith.constant 0 : index
    %c1_159 = arith.constant 1 : index
    %302 = memref.load %arg4[%c0_158, %c1_159] : memref<3x4xf32, #tpu.memory_space<smem>>
    %303 = vector.broadcast %302 : f32 to vector<1x128xf32>
    %304 = arith.mulf %303, %301 : vector<1x128xf32>
    %305 = arith.addf %291, %304 : vector<1x128xf32>
    %c1_160 = arith.constant 1 : index
    %c1_161 = arith.constant 1 : index
    %306 = memref.load %arg4[%c1_160, %c1_161] : memref<3x4xf32, #tpu.memory_space<smem>>
    %307 = vector.broadcast %306 : f32 to vector<1x128xf32>
    %308 = arith.mulf %307, %301 : vector<1x128xf32>
    %309 = arith.addf %295, %308 : vector<1x128xf32>
    %c2_162 = arith.constant 2 : index
    %c1_163 = arith.constant 1 : index
    %310 = memref.load %arg4[%c2_162, %c1_163] : memref<3x4xf32, #tpu.memory_space<smem>>
    %311 = vector.broadcast %310 : f32 to vector<1x128xf32>
    %312 = arith.mulf %311, %301 : vector<1x128xf32>
    %313 = arith.addf %299, %312 : vector<1x128xf32>
    %cst_164 = arith.constant 0.000000e+00 : f32
    %314 = vector.broadcast %cst_164 : f32 to vector<1x128xf32>
    %315 = arith.maximumf %275, %314 : vector<1x128xf32>
    %c0_165 = arith.constant 0 : index
    %c2_166 = arith.constant 2 : index
    %316 = memref.load %arg4[%c0_165, %c2_166] : memref<3x4xf32, #tpu.memory_space<smem>>
    %317 = vector.broadcast %316 : f32 to vector<1x128xf32>
    %318 = arith.mulf %317, %315 : vector<1x128xf32>
    %319 = arith.addf %305, %318 : vector<1x128xf32>
    %c1_167 = arith.constant 1 : index
    %c2_168 = arith.constant 2 : index
    %320 = memref.load %arg4[%c1_167, %c2_168] : memref<3x4xf32, #tpu.memory_space<smem>>
    %321 = vector.broadcast %320 : f32 to vector<1x128xf32>
    %322 = arith.mulf %321, %315 : vector<1x128xf32>
    %323 = arith.addf %309, %322 : vector<1x128xf32>
    %c2_169 = arith.constant 2 : index
    %c2_170 = arith.constant 2 : index
    %324 = memref.load %arg4[%c2_169, %c2_170] : memref<3x4xf32, #tpu.memory_space<smem>>
    %325 = vector.broadcast %324 : f32 to vector<1x128xf32>
    %326 = arith.mulf %325, %315 : vector<1x128xf32>
    %327 = arith.addf %313, %326 : vector<1x128xf32>
    %cst_171 = arith.constant 0.000000e+00 : f32
    %328 = vector.broadcast %cst_171 : f32 to vector<1x128xf32>
    %329 = arith.maximumf %279, %328 : vector<1x128xf32>
    %c0_172 = arith.constant 0 : index
    %c3_173 = arith.constant 3 : index
    %330 = memref.load %arg4[%c0_172, %c3_173] : memref<3x4xf32, #tpu.memory_space<smem>>
    %331 = vector.broadcast %330 : f32 to vector<1x128xf32>
    %332 = arith.mulf %331, %329 : vector<1x128xf32>
    %333 = arith.addf %319, %332 : vector<1x128xf32>
    %c1_174 = arith.constant 1 : index
    %c3_175 = arith.constant 3 : index
    %334 = memref.load %arg4[%c1_174, %c3_175] : memref<3x4xf32, #tpu.memory_space<smem>>
    %335 = vector.broadcast %334 : f32 to vector<1x128xf32>
    %336 = arith.mulf %335, %329 : vector<1x128xf32>
    %337 = arith.addf %323, %336 : vector<1x128xf32>
    %c2_176 = arith.constant 2 : index
    %c3_177 = arith.constant 3 : index
    %338 = memref.load %arg4[%c2_176, %c3_177] : memref<3x4xf32, #tpu.memory_space<smem>>
    %339 = vector.broadcast %338 : f32 to vector<1x128xf32>
    %340 = arith.mulf %339, %329 : vector<1x128xf32>
    %341 = arith.addf %327, %340 : vector<1x128xf32>
    %342 = arith.maximumf %333, %337 : vector<1x128xf32>
    %343 = arith.maximumf %342, %341 : vector<1x128xf32>
    %344 = arith.subf %333, %343 : vector<1x128xf32>
    %345 = math.exp %344 : vector<1x128xf32>
    %346 = arith.subf %337, %343 : vector<1x128xf32>
    %347 = math.exp %346 : vector<1x128xf32>
    %348 = arith.addf %345, %347 : vector<1x128xf32>
    %349 = arith.subf %341, %343 : vector<1x128xf32>
    %350 = math.exp %349 : vector<1x128xf32>
    %351 = arith.addf %348, %350 : vector<1x128xf32>
    %352 = math.log %351 : vector<1x128xf32>
    %353 = arith.addf %343, %352 : vector<1x128xf32>
    %354 = arith.subf %333, %353 : vector<1x128xf32>
    %c0_178 = arith.constant 0 : index
    %c0_179 = arith.constant 0 : index
    %355 = vector.load %arg6[%c0_178, %c0_179] : memref<3x128xf32, #tpu.memory_space<vmem>>, vector<1x128xf32>
    tpu.vector_store %arg6[%c0_178, %c0_179], %354 {strides = array<i32>} : memref<3x128xf32, #tpu.memory_space<vmem>>, vector<1x128xf32>,
    %356 = arith.subf %337, %353 : vector<1x128xf32>
    %c1_180 = arith.constant 1 : index
    %c0_181 = arith.constant 0 : index
    %357 = vector.load %arg6[%c1_180, %c0_181] : memref<3x128xf32, #tpu.memory_space<vmem>>, vector<1x128xf32>
    tpu.vector_store %arg6[%c1_180, %c0_181], %356 {strides = array<i32>} : memref<3x128xf32, #tpu.memory_space<vmem>>, vector<1x128xf32>,
    %358 = arith.subf %341, %353 : vector<1x128xf32>
    %c2_182 = arith.constant 2 : index
    %c0_183 = arith.constant 0 : index
    %359 = vector.load %arg6[%c2_182, %c0_183] : memref<3x128xf32, #tpu.memory_space<vmem>>, vector<1x128xf32>
    tpu.vector_store %arg6[%c2_182, %c0_183], %358 {strides = array<i32>} : memref<3x128xf32, #tpu.memory_space<vmem>>, vector<1x128xf32>,
    return
  }
  func.func @transform_0(%arg0: i32) -> (i32, i32) {
    %c0_i32 = arith.constant 0 : i32
    %c0_i32_0 = arith.constant 0 : i32
    return %c0_i32, %arg0 : i32, i32
  }
  func.func @transform_1(%arg0: i32) -> (i32, i32) {
    %c0_i32 = arith.constant 0 : i32
    %c0_i32_0 = arith.constant 0 : i32
    %c0_i32_1 = arith.constant 0 : i32
    return %c0_i32, %c0_i32_0 : i32, i32
  }
  func.func @transform_2(%arg0: i32) -> i32 {
    %c0_i32 = arith.constant 0 : i32
    %c0_i32_0 = arith.constant 0 : i32
    return %c0_i32 : i32
  }
  func.func @transform_3(%arg0: i32) -> (i32, i32) {
    %c0_i32 = arith.constant 0 : i32
    %c0_i32_0 = arith.constant 0 : i32
    %c0_i32_1 = arith.constant 0 : i32
    return %c0_i32, %c0_i32_0 : i32, i32
  }
  func.func @transform_4(%arg0: i32) -> i32 {
    %c0_i32 = arith.constant 0 : i32
    %c0_i32_0 = arith.constant 0 : i32
    return %c0_i32 : i32
  }
  func.func @transform_5(%arg0: i32) -> (i32, i32) {
    %c0_i32 = arith.constant 0 : i32
    %c0_i32_0 = arith.constant 0 : i32
    return %c0_i32, %arg0 : i32, i32
  }
}

</mosaic_0001>

<llo_original>
// kernel: tpu_custom_call.1
$region0: #{tpu_custom_call.1}
  #allocation0 [shape = 'u32[]', space=smem, size = 0x4, offset = 0x4, fixed_abs, tag = 'smem constant byte address 0x4 - core index']
  #allocation1 [shape = 'u32[72,128]{1,0:T(1,128)}', space=vmem, size = 0x9000, scoped, tag = 'internal scratch']
  %s0 = inlined_call_operand.hbm [shape: f32[16,128], index: 0, kind: input, shape index: {}]
  %s1 = inlined_call_operand.hbm [shape: f32[4,16], index: 1, kind: input, shape index: {}]
  %s2 = inlined_call_operand.vmem [shape: f32[4], index: 2, kind: input, shape index: {}]
  %s3 = inlined_call_operand.hbm [shape: f32[3,4], index: 3, kind: input, shape index: {}]
  %s4 = inlined_call_operand.vmem [shape: f32[3], index: 4, kind: input, shape index: {}]
  %s5 = inlined_call_operand.hbm [shape: f32[3,128], index: 5, kind: output, shape index: {}]
  %s6 = sld [smem:[#allocation0]]
  $region50: #{tpu_custom_call.1} parent=0
    _
  %s8 = ssub.s32 1, %s6
  %s9 = scalar_select 0, %s8, %s6
  $region1: #{tpu_custom_call.1} parent=0
    #allocation2 [shape = 'u8[8192]{0}', space=vmem, size = 0x2000, scoped, tag = 'input window, operand 0, single buffered']
    #allocation3 [shape = 's32[1]{0}', space=sflag, size = 0x4, scoped, tag = 'scoped memory for tpu_custom_call.1']
    #allocation4 [shape = 's32[1]{0}', space=sflag, size = 0x4, scoped, tag = 'scoped memory for tpu_custom_call.1']
    #allocation5 [shape = 's32[1]{0}', space=sflag, size = 0x4, scoped, tag = 'scoped memory for tpu_custom_call.1']
    #allocation6 [shape = 's32[1]{0}', space=sflag, size = 0x4, scoped, tag = 'scoped memory for tpu_custom_call.1']
    #allocation7 [shape = 'u8[2048]{0}', space=smem, size = 0x800, scoped, tag = 'input window, operand 1, single buffered']
    #allocation8 [shape = 'u8[512]{0}', space=smem, size = 0x200, scoped, tag = 'input window, operand 2, single buffered']
    #allocation9 [shape = 'u8[2048]{0}', space=smem, size = 0x800, scoped, tag = 'input window, operand 3, single buffered']
    #allocation10 [shape = 's32[1]{0}', space=sflag, size = 0x4, scoped, tag = 'scoped memory for tpu_custom_call.1']
    #allocation11 [shape = 'u8[512]{0}', space=smem, size = 0x200, scoped, tag = 'input window, operand 4, single buffered']
    #allocation12 [shape = 's32[1]{0}', space=sflag, size = 0x4, scoped, tag = 'scoped memory for tpu_custom_call.1']
    #allocation13 [shape = 'u8[2048]{0}', space=vmem, size = 0x800, scoped, tag = 'output window, operand 0, single buffered']
    %10 = vsyncpa [#allocation3], 0
    %11 = vsyncpa [#allocation5], 0
    %12 = vsyncpa [#allocation6], 0
    %13 = vsyncpa [#allocation10], 0
    %14 = vsyncpa [#allocation12], 0
    %15 = vsyncpa [#allocation4], 0
    // Predicated region
    $region2: #{tpu_custom_call.1} parent=1 // pred_check
      _
    $region3: #{tpu_custom_call.1} parent=1 // pred_check_branch
      %17 = sbr.rel (0) target = $region5
    $region4: #{tpu_custom_call.1} parent=1 // pred_region
      %19 = vsyncadd [#allocation3], 0
      %s20 = sshll.u32 %s0, 4
      %s21 = int_to_ptr.hbm [resolvable:$true] %s20
      %s22 = sshll.u32 [#allocation2], 4
      %s23 = int_to_ptr.vmem [resolvable:$true] %s22
      %28 = dma.hbm_to_vmem [thread:$0]  %s21, 256, %s23, [#allocation3], 128, 128, 8
    $region5: #{tpu_custom_call.1} parent=1 // pred_fallthru
      _
    // Predicated region
    $region6: #{tpu_custom_call.1} parent=1 // pred_check
      _
    $region7: #{tpu_custom_call.1} parent=1 // pred_check_branch
      %30 = sbr.rel (0) target = $region9
    $region8: #{tpu_custom_call.1} parent=1 // pred_region
      %32 = vsyncadd [#allocation5], 0
      %s34 = sshll.u32 %s1, 4
      %s35 = int_to_ptr.hbm [resolvable:$true] %s34
      %37 = dma.hbm_to_smem %s35, 64, [#allocation7], [#allocation5]
    $region9: #{tpu_custom_call.1} parent=1 // pred_fallthru
      _
    // Predicated region
    $region10: #{tpu_custom_call.1} parent=1 // pred_check
      _
    $region11: #{tpu_custom_call.1} parent=1 // pred_check_branch
      %39 = sbr.rel (0) target = $region13
    $region12: #{tpu_custom_call.1} parent=1 // pred_region
      %41 = vsyncadd [#allocation6], 0
      %s43 = sshll.u32 %s2, 4
      %s44 = int_to_ptr.vmem [resolvable:$true] %s43
      %46 = dma.vmem_to_smem %s44, 16, [#allocation8], [#allocation6]
    $region13: #{tpu_custom_call.1} parent=1 // pred_fallthru
      _
    // Predicated region
    $region14: #{tpu_custom_call.1} parent=1 // pred_check
      _
    $region15: #{tpu_custom_call.1} parent=1 // pred_check_branch
      %48 = sbr.rel (0) target = $region17
    $region16: #{tpu_custom_call.1} parent=1 // pred_region
      %50 = vsyncadd [#allocation10], 0
      %s52 = sshll.u32 %s3, 4
      %s53 = int_to_ptr.hbm [resolvable:$true] %s52
      %55 = dma.hbm_to_smem %s53, 64, [#allocation9], [#allocation10]
    $region17: #{tpu_custom_call.1} parent=1 // pred_fallthru
      _
    // Predicated region
    $region18: #{tpu_custom_call.1} parent=1 // pred_check
      _
    $region19: #{tpu_custom_call.1} parent=1 // pred_check_branch
      %57 = sbr.rel (0) target = $region21
    $region20: #{tpu_custom_call.1} parent=1 // pred_region
      %59 = vsyncadd [#allocation12], 0
      %s61 = sshll.u32 %s4, 4
      %s62 = int_to_ptr.vmem [resolvable:$true] %s61
      %64 = dma.vmem_to_smem %s62, 16, [#allocation11], [#allocation12]
    $region21: #{tpu_custom_call.1} parent=1 // pred_fallthru
      _
    // Predicated region
    $region22: #{tpu_custom_call.1} parent=1 // pred_check
      _
    $region23: #{tpu_custom_call.1} parent=1 // pred_check_branch
      %66 = sbr.rel (0) target = $region25
    $region24: #{tpu_custom_call.1} parent=1 // pred_region
      %68 = dma.done [#allocation3], 256
    $region25: #{tpu_custom_call.1} parent=1 // pred_fallthru
      _
    // Predicated region
    $region26: #{tpu_custom_call.1} parent=1 // pred_check
      _
    $region27: #{tpu_custom_call.1} parent=1 // pred_check_branch
      %70 = sbr.rel (0) target = $region29
    $region28: #{tpu_custom_call.1} parent=1 // pred_region
      %72 = dma.done [#allocation5], 64
    $region29: #{tpu_custom_call.1} parent=1 // pred_fallthru
      _
    // Predicated region
    $region30: #{tpu_custom_call.1} parent=1 // pred_check
      _
    $region31: #{tpu_custom_call.1} parent=1 // pred_check_branch
      %74 = sbr.rel (0) target = $region33
    $region32: #{tpu_custom_call.1} parent=1 // pred_region
      %76 = dma.done [#allocation6], 16
    $region33: #{tpu_custom_call.1} parent=1 // pred_fallthru
      _
    // Predicated region
    $region34: #{tpu_custom_call.1} parent=1 // pred_check
      _
    $region35: #{tpu_custom_call.1} parent=1 // pred_check_branch
      %78 = sbr.rel (0) target = $region37
    $region36: #{tpu_custom_call.1} parent=1 // pred_region
      %80 = dma.done [#allocation10], 64
    $region37: #{tpu_custom_call.1} parent=1 // pred_fallthru
      _
    // Predicated region
    $region38: #{tpu_custom_call.1} parent=1 // pred_check
      _
    $region39: #{tpu_custom_call.1} parent=1 // pred_check_branch
      %82 = sbr.rel (0) target = $region41
    $region40: #{tpu_custom_call.1} parent=1 // pred_region
      %84 = dma.done [#allocation12], 16
    $region41: #{tpu_custom_call.1} parent=1 // pred_fallthru
      _
    %85 = sfence
    %s86 = sld [smem:[#allocation8]]
    %v87 = vstv %s86
    %s88 = sld [smem:[#allocation8 + $0x1]]
    %v89 = vstv %s88
    %s90 = sld [smem:[#allocation8 + $0x2]]
    %v91 = vstv %s90
    %s92 = sld [smem:[#allocation8 + $0x3]]
    %v93 = vstv %s92
    %v94 = vld [vmem:[#allocation2] sm:$0x1]
    %s95 = sld [smem:[#allocation7]]
    %v96 = vstv %s95
    %v97 = vmul.f32 %v96, %v94
    %v98 = vadd.f32 %v87, %v97
    %s99 = sld [smem:[#allocation7 + $0x80]]
    %v100 = vstv %s99
    %v101 = vmul.f32 %v100, %v94
    %v102 = vadd.f32 %v89, %v101
    %s103 = sld [smem:[#allocation7 + $0x100]]
    %v104 = vstv %s103
    %v105 = vmul.f32 %v104, %v94
    %v106 = vadd.f32 %v91, %v105
    %s107 = sld [smem:[#allocation7 + $0x180]]
    %v108 = vstv %s107
    %v109 = vmul.f32 %v108, %v94
    %v110 = vadd.f32 %v93, %v109
    %v111 = vld [vmem:[#allocation2 + $0x1] sm:$0x1]
    %s112 = sld [smem:[#allocation7 + $0x1]]
    %v113 = vstv %s112
    %v114 = vmul.f32 %v113, %v111
    %v115 = vadd.f32 %v98, %v114
    %s116 = sld [smem:[#allocation7 + $0x81]]
    %v117 = vstv %s116
    %v118 = vmul.f32 %v117, %v111
    %v119 = vadd.f32 %v102, %v118
    %s120 = sld [smem:[#allocation7 + $0x101]]
    %v121 = vstv %s120
    %v122 = vmul.f32 %v121, %v111
    %v123 = vadd.f32 %v106, %v122
    %s124 = sld [smem:[#allocation7 + $0x181]]
    %v125 = vstv %s124
    %v126 = vmul.f32 %v125, %v111
    %v127 = vadd.f32 %v110, %v126
    %v128 = vld [vmem:[#allocation2 + $0x2] sm:$0x1]
    %s129 = sld [smem:[#allocation7 + $0x2]]
    %v130 = vstv %s129
    %v131 = vmul.f32 %v130, %v128
    %v132 = vadd.f32 %v115, %v131
    %s133 = sld [smem:[#allocation7 + $0x82]]
    %v134 = vstv %s133
    %v135 = vmul.f32 %v134, %v128
    %v136 = vadd.f32 %v119, %v135
    %s137 = sld [smem:[#allocation7 + $0x102]]
    %v138 = vstv %s137
    %v139 = vmul.f32 %v138, %v128
    %v140 = vadd.f32 %v123, %v139
    %s141 = sld [smem:[#allocation7 + $0x182]]
    %v142 = vstv %s141
    %v143 = vmul.f32 %v142, %v128
    %v144 = vadd.f32 %v127, %v143
    %v145 = vld [vmem:[#allocation2 + $0x3] sm:$0x1]
    %s146 = sld [smem:[#allocation7 + $0x3]]
    %v147 = vstv %s146
    %v148 = vmul.f32 %v147, %v145
    %v149 = vadd.f32 %v132, %v148
    %s150 = sld [smem:[#allocation7 + $0x83]]
    %v151 = vstv %s150
    %v152 = vmul.f32 %v151, %v145
    %v153 = vadd.f32 %v136, %v152
    %s154 = sld [smem:[#allocation7 + $0x103]]
    %v155 = vstv %s154
    %v156 = vmul.f32 %v155, %v145
    %v157 = vadd.f32 %v140, %v156
    %s158 = sld [smem:[#allocation7 + $0x183]]
    %v159 = vstv %s158
    %v160 = vmul.f32 %v159, %v145
    %v161 = vadd.f32 %v144, %v160
    %v162 = vld [vmem:[#allocation2 + $0x4] sm:$0x1]
    %s163 = sld [smem:[#allocation7 + $0x4]]
    %v164 = vstv %s163
    %v165 = vmul.f32 %v164, %v162
    %v166 = vadd.f32 %v149, %v165
    %s167 = sld [smem:[#allocation7 + $0x84]]
    %v168 = vstv %s167
    %v169 = vmul.f32 %v168, %v162
    %v170 = vadd.f32 %v153, %v169
    %s171 = sld [smem:[#allocation7 + $0x104]]
    %v172 = vstv %s171
    %v173 = vmul.f32 %v172, %v162
    %v174 = vadd.f32 %v157, %v173
    %s175 = sld [smem:[#allocation7 + $0x184]]
    %v176 = vstv %s175
    %v177 = vmul.f32 %v176, %v162
    %v178 = vadd.f32 %v161, %v177
    %v179 = vld [vmem:[#allocation2 + $0x5] sm:$0x1]
    %s180 = sld [smem:[#allocation7 + $0x5]]
    %v181 = vstv %s180
    %v182 = vmul.f32 %v181, %v179
    %v183 = vadd.f32 %v166, %v182
    %s184 = sld [smem:[#allocation7 + $0x85]]
    %v185 = vstv %s184
    %v186 = vmul.f32 %v185, %v179
    %v187 = vadd.f32 %v170, %v186
    %s188 = sld [smem:[#allocation7 + $0x105]]
    %v189 = vstv %s188
    %v190 = vmul.f32 %v189, %v179
    %v191 = vadd.f32 %v174, %v190
    %s192 = sld [smem:[#allocation7 + $0x185]]
    %v193 = vstv %s192
    %v194 = vmul.f32 %v193, %v179
    %v195 = vadd.f32 %v178, %v194
    %v196 = vld [vmem:[#allocation2 + $0x6] sm:$0x1]
    %s197 = sld [smem:[#allocation7 + $0x6]]
    %v198 = vstv %s197
    %v199 = vmul.f32 %v198, %v196
    %v200 = vadd.f32 %v183, %v199
    %s201 = sld [smem:[#allocation7 + $0x86]]
    %v202 = vstv %s201
    %v203 = vmul.f32 %v202, %v196
    %v204 = vadd.f32 %v187, %v203
    %s205 = sld [smem:[#allocation7 + $0x106]]
    %v206 = vstv %s205
    %v207 = vmul.f32 %v206, %v196
    %v208 = vadd.f32 %v191, %v207
    %s209 = sld [smem:[#allocation7 + $0x186]]
    %v210 = vstv %s209
    %v211 = vmul.f32 %v210, %v196
    %v212 = vadd.f32 %v195, %v211
    %v213 = vld [vmem:[#allocation2 + $0x7] sm:$0x1]
    %s214 = sld [smem:[#allocation7 + $0x7]]
    %v215 = vstv %s214
    %v216 = vmul.f32 %v215, %v213
    %v217 = vadd.f32 %v200, %v216
    %s218 = sld [smem:[#allocation7 + $0x87]]
    %v219 = vstv %s218
    %v220 = vmul.f32 %v219, %v213
    %v221 = vadd.f32 %v204, %v220
    %s222 = sld [smem:[#allocation7 + $0x107]]
    %v223 = vstv %s222
    %v224 = vmul.f32 %v223, %v213
    %v225 = vadd.f32 %v208, %v224
    %s226 = sld [smem:[#allocation7 + $0x187]]
    %v227 = vstv %s226
    %v228 = vmul.f32 %v227, %v213
    %v229 = vadd.f32 %v212, %v228
    %v230 = vld [vmem:[#allocation2 + $0x8] sm:$0x1]
    %s231 = sld [smem:[#allocation7 + $0x8]]
    %v232 = vstv %s231
    %v233 = vmul.f32 %v232, %v230
    %v234 = vadd.f32 %v217, %v233
    %s235 = sld [smem:[#allocation7 + $0x88]]
    %v236 = vstv %s235
    %v237 = vmul.f32 %v236, %v230
    %v238 = vadd.f32 %v221, %v237
    %s239 = sld [smem:[#allocation7 + $0x108]]
    %v240 = vstv %s239
    %v241 = vmul.f32 %v240, %v230
    %v242 = vadd.f32 %v225, %v241
    %s243 = sld [smem:[#allocation7 + $0x188]]
    %v244 = vstv %s243
    %v245 = vmul.f32 %v244, %v230
    %v246 = vadd.f32 %v229, %v245
    %v247 = vld [vmem:[#allocation2 + $0x9] sm:$0x1]
    %s248 = sld [smem:[#allocation7 + $0x9]]
    %v249 = vstv %s248
    %v250 = vmul.f32 %v249, %v247
    %v251 = vadd.f32 %v234, %v250
    %s252 = sld [smem:[#allocation7 + $0x89]]
    %v253 = vstv %s252
    %v254 = vmul.f32 %v253, %v247
    %v255 = vadd.f32 %v238, %v254
    %s256 = sld [smem:[#allocation7 + $0x109]]
    %v257 = vstv %s256
    %v258 = vmul.f32 %v257, %v247
    %v259 = vadd.f32 %v242, %v258
    %s260 = sld [smem:[#allocation7 + $0x189]]
    %v261 = vstv %s260
    %v262 = vmul.f32 %v261, %v247
    %v263 = vadd.f32 %v246, %v262
    %v264 = vld [vmem:[#allocation2 + $0xa] sm:$0x1]
    %s265 = sld [smem:[#allocation7 + $0xa]]
    %v266 = vstv %s265
    %v267 = vmul.f32 %v266, %v264
    %v268 = vadd.f32 %v251, %v267
    %s269 = sld [smem:[#allocation7 + $0x8a]]
    %v270 = vstv %s269
    %v271 = vmul.f32 %v270, %v264
    %v272 = vadd.f32 %v255, %v271
    %s273 = sld [smem:[#allocation7 + $0x10a]]
    %v274 = vstv %s273
    %v275 = vmul.f32 %v274, %v264
    %v276 = vadd.f32 %v259, %v275
    %s277 = sld [smem:[#allocation7 + $0x18a]]
    %v278 = vstv %s277
    %v279 = vmul.f32 %v278, %v264
    %v280 = vadd.f32 %v263, %v279
    %v281 = vld [vmem:[#allocation2 + $0xb] sm:$0x1]
    %s282 = sld [smem:[#allocation7 + $0xb]]
    %v283 = vstv %s282
    %v284 = vmul.f32 %v283, %v281
    %v285 = vadd.f32 %v268, %v284
    %s286 = sld [smem:[#allocation7 + $0x8b]]
    %v287 = vstv %s286
    %v288 = vmul.f32 %v287, %v281
    %v289 = vadd.f32 %v272, %v288
    %s290 = sld [smem:[#allocation7 + $0x10b]]
    %v291 = vstv %s290
    %v292 = vmul.f32 %v291, %v281
    %v293 = vadd.f32 %v276, %v292
    %s294 = sld [smem:[#allocation7 + $0x18b]]
    %v295 = vstv %s294
    %v296 = vmul.f32 %v295, %v281
    %v297 = vadd.f32 %v280, %v296
    %v298 = vld [vmem:[#allocation2 + $0xc] sm:$0x1]
    %s299 = sld [smem:[#allocation7 + $0xc]]
    %v300 = vstv %s299
    %v301 = vmul.f32 %v300, %v298
    %v302 = vadd.f32 %v285, %v301
    %s303 = sld [smem:[#allocation7 + $0x8c]]
    %v304 = vstv %s303
    %v305 = vmul.f32 %v304, %v298
    %v306 = vadd.f32 %v289, %v305
    %s307 = sld [smem:[#allocation7 + $0x10c]]
    %v308 = vstv %s307
    %v309 = vmul.f32 %v308, %v298
    %v310 = vadd.f32 %v293, %v309
    %s311 = sld [smem:[#allocation7 + $0x18c]]
    %v312 = vstv %s311
    %v313 = vmul.f32 %v312, %v298
    %v314 = vadd.f32 %v297, %v313
    %v315 = vld [vmem:[#allocation2 + $0xd] sm:$0x1]
    %s316 = sld [smem:[#allocation7 + $0xd]]
    %v317 = vstv %s316
    %v318 = vmul.f32 %v317, %v315
    %v319 = vadd.f32 %v302, %v318
    %s320 = sld [smem:[#allocation7 + $0x8d]]
    %v321 = vstv %s320
    %v322 = vmul.f32 %v321, %v315
    %v323 = vadd.f32 %v306, %v322
    %s324 = sld [smem:[#allocation7 + $0x10d]]
    %v325 = vstv %s324
    %v326 = vmul.f32 %v325, %v315
    %v327 = vadd.f32 %v310, %v326
    %s328 = sld [smem:[#allocation7 + $0x18d]]
    %v329 = vstv %s328
    %v330 = vmul.f32 %v329, %v315
    %v331 = vadd.f32 %v314, %v330
    %v332 = vld [vmem:[#allocation2 + $0xe] sm:$0x1]
    %s333 = sld [smem:[#allocation7 + $0xe]]
    %v334 = vstv %s333
    %v335 = vmul.f32 %v334, %v332
    %v336 = vadd.f32 %v319, %v335
    %s337 = sld [smem:[#allocation7 + $0x8e]]
    %v338 = vstv %s337
    %v339 = vmul.f32 %v338, %v332
    %v340 = vadd.f32 %v323, %v339
    %s341 = sld [smem:[#allocation7 + $0x10e]]
    %v342 = vstv %s341
    %v343 = vmul.f32 %v342, %v332
    %v344 = vadd.f32 %v327, %v343
    %s345 = sld [smem:[#allocation7 + $0x18e]]
    %v346 = vstv %s345
    %v347 = vmul.f32 %v346, %v332
    %v348 = vadd.f32 %v331, %v347
    %v349 = vld [vmem:[#allocation2 + $0xf] sm:$0x1]
    %s350 = sld [smem:[#allocation7 + $0xf]]
    %v351 = vstv %s350
    %v352 = vmul.f32 %v351, %v349
    %v353 = vadd.f32 %v336, %v352
    %s354 = sld [smem:[#allocation7 + $0x8f]]
    %v355 = vstv %s354
    %v356 = vmul.f32 %v355, %v349
    %v357 = vadd.f32 %v340, %v356
    %s358 = sld [smem:[#allocation7 + $0x10f]]
    %v359 = vstv %s358
    %v360 = vmul.f32 %v359, %v349
    %v361 = vadd.f32 %v344, %v360
    %s362 = sld [smem:[#allocation7 + $0x18f]]
    %v363 = vstv %s362
    %v364 = vmul.f32 %v363, %v349
    %v365 = vadd.f32 %v348, %v364
    %s366 = sld [smem:[#allocation11]]
    %v367 = vstv %s366
    %s368 = sld [smem:[#allocation11 + $0x1]]
    %v369 = vstv %s368
    %s370 = sld [smem:[#allocation11 + $0x2]]
    %v371 = vstv %s370
    %v372 = vmax.f32 %v353, 0.0
    %s373 = sld [smem:[#allocation9]]
    %v374 = vstv %s373
    %v375 = vmul.f32 %v374, %v372
    %v376 = vadd.f32 %v367, %v375
    %s377 = sld [smem:[#allocation9 + $0x80]]
    %v378 = vstv %s377
    %v379 = vmul.f32 %v378, %v372
    %v380 = vadd.f32 %v369, %v379
    %s381 = sld [smem:[#allocation9 + $0x100]]
    %v382 = vstv %s381
    %v383 = vmul.f32 %v382, %v372
    %v384 = vadd.f32 %v371, %v383
    %v385 = vmax.f32 %v357, 0.0
    %s386 = sld [smem:[#allocation9 + $0x1]]
    %v387 = vstv %s386
    %v388 = vmul.f32 %v387, %v385
    %v389 = vadd.f32 %v376, %v388
    %s390 = sld [smem:[#allocation9 + $0x81]]
    %v391 = vstv %s390
    %v392 = vmul.f32 %v391, %v385
    %v393 = vadd.f32 %v380, %v392
    %s394 = sld [smem:[#allocation9 + $0x101]]
    %v395 = vstv %s394
    %v396 = vmul.f32 %v395, %v385
    %v397 = vadd.f32 %v384, %v396
    %v398 = vmax.f32 %v361, 0.0
    %s399 = sld [smem:[#allocation9 + $0x2]]
    %v400 = vstv %s399
    %v401 = vmul.f32 %v400, %v398
    %v402 = vadd.f32 %v389, %v401
    %s403 = sld [smem:[#allocation9 + $0x82]]
    %v404 = vstv %s403
    %v405 = vmul.f32 %v404, %v398
    %v406 = vadd.f32 %v393, %v405
    %s407 = sld [smem:[#allocation9 + $0x102]]
    %v408 = vstv %s407
    %v409 = vmul.f32 %v408, %v398
    %v410 = vadd.f32 %v397, %v409
    %v411 = vmax.f32 %v365, 0.0
    %s412 = sld [smem:[#allocation9 + $0x3]]
    %v413 = vstv %s412
    %v414 = vmul.f32 %v413, %v411
    %v415 = vadd.f32 %v402, %v414
    %s416 = sld [smem:[#allocation9 + $0x83]]
    %v417 = vstv %s416
    %v418 = vmul.f32 %v417, %v411
    %v419 = vadd.f32 %v406, %v418
    %s420 = sld [smem:[#allocation9 + $0x103]]
    %v421 = vstv %s420
    %v422 = vmul.f32 %v421, %v411
    %v423 = vadd.f32 %v410, %v422
    %v424 = vmax.f32 %v415, %v419
    %v425 = vmax.f32 %v424, %v423
    %v426 = vsub.f32 %v415, %v425
    %v427 = vmul.f32 %v426, 1.442695
    %v428 = vpow.pop %v427
    %v429 = vsub.f32 %v419, %v425
    %v430 = vmul.f32 %v429, 1.442695
    %v431 = vpow.pop %v430
    %v432 = vadd.f32 %v428, %v431
    %v433 = vsub.f32 %v423, %v425
    %v434 = vmul.f32 %v433, 1.442695
    %v435 = vpow.pop %v434
    %v436 = vadd.f32 %v432, %v435
    %v437 = vlog2.pop %v436
    %v438 = vmul.f32 %v437, 0.6931472
    %v439 = vadd.f32 %v425, %v438
    %v440 = vsub.f32 %v415, %v439
    %441 = vst [vmem:[#allocation13] sm:$0x1] %v440
    %v442 = vsub.f32 %v419, %v439
    %443 = vst [vmem:[#allocation13 + $0x1] sm:$0x1] %v442
    %v444 = vsub.f32 %v423, %v439
    %445 = vst [vmem:[#allocation13 + $0x2] sm:$0x1] %v444
    // Predicated region
    $region42: #{tpu_custom_call.1} parent=1 // pred_check
      _
    $region43: #{tpu_custom_call.1} parent=1 // pred_check_branch
      %447 = sbr.rel (0) target = $region45
    $region44: #{tpu_custom_call.1} parent=1 // pred_region
      %449 = vsyncadd [#allocation4], 0
      %s451 = sshll.u32 [#allocation13], 4
      %s452 = int_to_ptr.vmem [resolvable:$true] %s451
      %s453 = sshll.u32 %s5, 4
      %s454 = int_to_ptr.hbm [resolvable:$true] %s453
      %456 = dma.vmem_to_hbm [thread:$0]  %s452, 64, %s454, [#allocation4]
    $region45: #{tpu_custom_call.1} parent=1 // pred_fallthru
      _
    // Predicated region
    $region46: #{tpu_custom_call.1} parent=1 // pred_check
      _
    $region47: #{tpu_custom_call.1} parent=1 // pred_check_branch
      %458 = sbr.rel (0) target = $region49
    $region48: #{tpu_custom_call.1} parent=1 // pred_region
      %460 = dma.done [#allocation4], 64
    $region49: #{tpu_custom_call.1} parent=1 // pred_fallthru
      _
    %461 = vsyncpa [#allocation3], 1
    %462 = vsyncpa [#allocation4], 1
    %463 = vsyncpa [#allocation5], 1
    %464 = vsyncpa [#allocation10], 1
    %465 = vsyncpa [#allocation6], 1
    %466 = vsyncpa [#allocation12], 1

</llo_original>
